<compile_context>
chip_gen: v5e
topology: v5e:2x2
jax: 0.10.0
libtpu: 0.0.40
codegen_flags: <defaults>
</compile_context>

<pallas_src>
import jax
import jax.numpy as jnp
from jax import lax
from jax.experimental import pallas as pl
from jax.experimental.pallas import tpu as pltpu


def dual_memory_kernel(x_ref, mem_t_ref, out_p_ref, out_s_ref):
    # x:     [B, D]
    # mem_t: [D, 2M]   (primary columns 0..M-1, secondary columns M..2M-1)
    # out_p: [B, M]    euclidean distances to primary memory rows
    # out_s: [B, M]    euclidean distances to secondary memory rows
    x = x_ref[...]
    mem_t = mem_t_ref[...]

    # MXU-native [B, D] x [D, 2M] contraction, f32 accumulation, full-f32
    # multi-pass precision (MXU is ~idle at these shapes, so this is free).
    xm = jnp.dot(
        x,
        mem_t,
        preferred_element_type=jnp.float32,
        precision=lax.Precision.HIGHEST,
    )  # [B, 2M]

    # Tiny f32 epilogue (safe even if inputs arrive as bf16).
    xf = x.astype(jnp.float32)
    x_norm2 = jnp.sum(xf * xf, axis=1, keepdims=True)          # [B, 1]

    mtf = mem_t.astype(jnp.float32)
    m_norm2 = jnp.sum(mtf * mtf, axis=0, keepdims=True)        # [1, 2M]

    d2 = x_norm2 + m_norm2 - 2.0 * xm
    dist = jnp.sqrt(jnp.maximum(d2, 0.0))                      # [B, 2M]

    m = out_p_ref.shape[1]
    out_p_ref[...] = dist[:, :m].astype(out_p_ref.dtype)
    out_s_ref[...] = dist[:, m:].astype(out_s_ref.dtype)


def prepare_dual_memory(primary_memory, secondary_memory):
    """One-time parameter prep: stack & transpose memories into [D, 2M] f32.

    Call this when parameters are created/updated, NOT per forward call.
    """
    mem = jnp.concatenate([primary_memory, secondary_memory], axis=0)  # [2M, D]
    return jnp.transpose(mem).astype(jnp.float32)                      # [D, 2M]


def dual_memory_forward(feature_vector, mem_t):
    """feature_vector: [B, D], mem_t: [D, 2M] (from prepare_dual_memory).

    Returns (primary_similarity, secondary_similarity), each [B, M] f32.
    """
    B, D = feature_vector.shape
    two_m = mem_t.shape[1]
    M = two_m // 2

    # Problem is tiny (launch/DMA-latency bound): no grid, whole arrays
    # resident in VMEM, single kernel invocation, two lane-dense outputs.
    out_p, out_s = pl.pallas_call(
        dual_memory_kernel,
        out_shape=(
            jax.ShapeDtypeStruct((B, M), jnp.float32),
            jax.ShapeDtypeStruct((B, M), jnp.float32),
        ),
        in_specs=[
            pl.BlockSpec(memory_space=pltpu.MemorySpace.VMEM),
            pl.BlockSpec(memory_space=pltpu.MemorySpace.VMEM),
        ],
        out_specs=(
            pl.BlockSpec(memory_space=pltpu.MemorySpace.VMEM),
            pl.BlockSpec(memory_space=pltpu.MemorySpace.VMEM),
        ),
    )(feature_vector, mem_t)

    return out_p, out_s


if __name__ == "__main__":
    # Small shapes consistent with the module: batch=2, input_size=32,
    # memory_size=128 (the module default).
    B, D, M = 2, 32, 128

    key = jax.random.PRNGKey(0)
    k_x, k_p, k_s = jax.random.split(key, 3)

    feature_vector = jax.random.normal(k_x, (B, D), dtype=jnp.float32)
    # Deterministic parameter init mirroring: torch.randn(M, D) * 0.01
    primary_memory = jax.random.normal(k_p, (M, D), dtype=jnp.float32) * 0.01
    secondary_memory = jax.random.normal(k_s, (M, D), dtype=jnp.float32) * 0.01

    # Parameter-prep (done once per parameter update, off the forward path).
    mem_t = prepare_dual_memory(primary_memory, secondary_memory)
    jax.block_until_ready(mem_t)

    psim, ssim = dual_memory_forward(feature_vector, mem_t)
    jax.block_until_ready((psim, ssim))

    # Reference check in plain JAX (same math as torch.norm(..., dim=2)).
    ref_p = jnp.sqrt(
        jnp.sum((primary_memory[None, :, :] - feature_vector[:, None, :]) ** 2, axis=2)
    )
    ref_s = jnp.sqrt(
        jnp.sum((secondary_memory[None, :, :] - feature_vector[:, None, :]) ** 2, axis=2)
    )
    assert psim.shape == (B, M) and ssim.shape == (B, M)
    assert jnp.allclose(psim, ref_p, atol=1e-5, rtol=1e-5)
    assert jnp.allclose(ssim, ref_s, atol=1e-5, rtol=1e-5)

    print("KERNEL_OK")
</pallas_src>

<mosaic_0001>
module attributes {stable_mosaic.version = 11 : i64} {
  func.func @dual_memory_kernel(%arg0: memref<2x32xf32, #tpu.memory_space<vmem>>, %arg1: memref<32x256xf32, #tpu.memory_space<vmem>>, %arg2: memref<2x128xf32, #tpu.memory_space<vmem>>, %arg3: memref<2x128xf32, #tpu.memory_space<vmem>>) attributes {dimension_semantics = [], scalar_prefetch = 0 : i64, scratch_operands = 0 : i64, tpu.core_type = #tpu.core_type<tc>} {
    %c0 = arith.constant 0 : index
    %c0_0 = arith.constant 0 : index
    %0 = vector.load %arg0[%c0, %c0_0] : memref<2x32xf32, #tpu.memory_space<vmem>>, vector<2x32xf32>
    %c0_1 = arith.constant 0 : index
    %c0_2 = arith.constant 0 : index
    %1 = vector.load %arg1[%c0_1, %c0_2] : memref<32x256xf32, #tpu.memory_space<vmem>>, vector<32x256xf32>
    %cst = arith.constant dense<0.000000e+00> : vector<2x256xf32>
    %2 = tpu.matmul %0, %1, %cst {dimension_numbers = #tpu.dot_dimension_numbers<[1], [0], [0], [1], [0, 0, 1, 1], [], []>, precision = #tpu.contract_precision<fp32>} : vector<2x32xf32>, vector<32x256xf32>, vector<2x256xf32> -> vector<2x256xf32>
    %3 = arith.mulf %0, %0 : vector<2x32xf32>
    %cst_3 = arith.constant dense<0.000000e+00> : vector<2xf32>
    %4 = vector.multi_reduction <add>, %3, %cst_3 [1] : vector<2x32xf32> to vector<2xf32>
    %5 = vector.shape_cast %4 : vector<2xf32> to vector<2x1xf32>
    %6 = arith.mulf %1, %1 : vector<32x256xf32>
    %cst_4 = arith.constant dense<0.000000e+00> : vector<256xf32>
    %7 = vector.multi_reduction <add>, %6, %cst_4 [0] : vector<32x256xf32> to vector<256xf32>
    %8 = vector.shape_cast %7 : vector<256xf32> to vector<1x256xf32>
    %9 = vector.broadcast %5 : vector<2x1xf32> to vector<2x256xf32>
    %10 = vector.broadcast %8 : vector<1x256xf32> to vector<2x256xf32>
    %11 = arith.addf %9, %10 : vector<2x256xf32>
    %cst_5 = arith.constant 2.000000e+00 : f32
    %12 = vector.broadcast %cst_5 : f32 to vector<2x256xf32>
    %13 = arith.mulf %12, %2 : vector<2x256xf32>
    %14 = arith.subf %11, %13 : vector<2x256xf32>
    %cst_6 = arith.constant 0.000000e+00 : f32
    %15 = vector.broadcast %cst_6 : f32 to vector<2x256xf32>
    %16 = arith.maximumf %14, %15 : vector<2x256xf32>
    %17 = math.sqrt %16 : vector<2x256xf32>
    %18 = vector.extract_strided_slice %17 {offsets = [0, 0], sizes = [2, 128], strides = [1, 1]} : vector<2x256xf32> to vector<2x128xf32>
    %c0_7 = arith.constant 0 : index
    %c0_8 = arith.constant 0 : index
    %19 = vector.load %arg2[%c0_7, %c0_8] : memref<2x128xf32, #tpu.memory_space<vmem>>, vector<2x128xf32>
    tpu.vector_store %arg2[%c0_7, %c0_8], %18 {strides = array<i32>} : memref<2x128xf32, #tpu.memory_space<vmem>>, vector<2x128xf32>,
    %20 = vector.extract_strided_slice %17 {offsets = [0, 128], sizes = [2, 128], strides = [1, 1]} : vector<2x256xf32> to vector<2x128xf32>
    %c0_9 = arith.constant 0 : index
    %c0_10 = arith.constant 0 : index
    %21 = vector.load %arg3[%c0_9, %c0_10] : memref<2x128xf32, #tpu.memory_space<vmem>>, vector<2x128xf32>
    tpu.vector_store %arg3[%c0_9, %c0_10], %20 {strides = array<i32>} : memref<2x128xf32, #tpu.memory_space<vmem>>, vector<2x128xf32>,
    return
  }
}

</mosaic_0001>

<llo_original>
// kernel: tpu_custom_call.1
$region0: #{tpu_custom_call.1}
  #allocation0 [shape = 'u32[]', space=smem, size = 0x4, offset = 0x4, fixed_abs, tag = 'smem constant byte address 0x4 - core index']
  #allocation1 [shape = 'u32[72,128]{1,0:T(1,128)}', space=vmem, size = 0x9000, scoped, tag = 'internal scratch']
  %s0 = inlined_call_operand.hbm [shape: f32[2,32], index: 0, kind: input, shape index: {}]
  %s1 = inlined_call_operand.hbm [shape: f32[32,256], index: 1, kind: input, shape index: {}]
  %s2 = inlined_call_operand.hbm [shape: f32[2,128], index: 2, kind: output, shape index: {0}]
  %s3 = inlined_call_operand.hbm [shape: f32[2,128], index: 3, kind: output, shape index: {1}]
  %4 = xla_tuple %s2, %s3
  %s5 = sld [smem:[#allocation0]]
  $region34: #{tpu_custom_call.1} parent=0
    _
  %s7 = ssub.s32 1, %s5
  %s8 = scalar_select 0, %s7, %s5
  $region1: #{tpu_custom_call.1} parent=0
    #allocation2 [shape = 'u8[1024]{0}', space=vmem, size = 0x400, scoped, tag = 'input window, operand 0, single buffered']
    #allocation3 [shape = 's32[1]{0}', space=sflag, size = 0x4, scoped, tag = 'scoped memory for tpu_custom_call.1']
    #allocation4 [shape = 's32[1]{0}', space=sflag, size = 0x4, scoped, tag = 'scoped memory for tpu_custom_call.1']
    #allocation5 [shape = 'u8[32768]{0}', space=vmem, size = 0x8000, scoped, tag = 'input window, operand 1, single buffered']
    #allocation6 [shape = 's32[1]{0}', space=sflag, size = 0x4, scoped, tag = 'scoped memory for tpu_custom_call.1']
    #allocation7 [shape = 'u8[1024]{0}', space=vmem, size = 0x400, scoped, tag = 'output window, operand 0, single buffered']
    #allocation8 [shape = 'u8[1024]{0}', space=vmem, size = 0x400, scoped, tag = 'output window, operand 1, single buffered']
    #allocation9 [shape = 's32[1]{0}', space=sflag, size = 0x4, scoped, tag = 'scoped memory for tpu_custom_call.1']
    %9 = vsyncpa [#allocation3], 0
    %10 = vsyncpa [#allocation6], 0
    %11 = vsyncpa [#allocation4], 0
    %12 = vsyncpa [#allocation9], 0
    // Predicated region
    $region2: #{tpu_custom_call.1} parent=1 // pred_check
      _
    $region3: #{tpu_custom_call.1} parent=1 // pred_check_branch
      %14 = sbr.rel (0) target = $region5
    $region4: #{tpu_custom_call.1} parent=1 // pred_region
      %16 = vsyncadd [#allocation3], 0
      %s18 = sshll.u32 %s0, 4
      %s19 = int_to_ptr.hbm [resolvable:$true] %s18
      %s20 = sshll.u32 [#allocation2], 4
      %s21 = int_to_ptr.vmem [resolvable:$true] %s20
      %23 = dma.hbm_to_vmem [thread:$0]  %s19, 32, %s21, [#allocation3]
    $region5: #{tpu_custom_call.1} parent=1 // pred_fallthru
      _
    // Predicated region
    $region6: #{tpu_custom_call.1} parent=1 // pred_check
      _
    $region7: #{tpu_custom_call.1} parent=1 // pred_check_branch
      %25 = sbr.rel (0) target = $region9
    $region8: #{tpu_custom_call.1} parent=1 // pred_region
      %27 = vsyncadd [#allocation6], 0
      %s28 = sshll.u32 %s1, 4
      %s29 = int_to_ptr.hbm [resolvable:$true] %s28
      %s30 = sshll.u32 [#allocation5], 4
      %s31 = int_to_ptr.vmem [resolvable:$true] %s30
      %36 = dma.hbm_to_vmem [thread:$0]  %s29, 1024, %s31, [#allocation6], 256, 256, 16
    $region9: #{tpu_custom_call.1} parent=1 // pred_fallthru
      _
    // Predicated region
    $region10: #{tpu_custom_call.1} parent=1 // pred_check
      _
    $region11: #{tpu_custom_call.1} parent=1 // pred_check_branch
      %38 = sbr.rel (0) target = $region13
    $region12: #{tpu_custom_call.1} parent=1 // pred_region
      %40 = dma.done [#allocation3], 32
    $region13: #{tpu_custom_call.1} parent=1 // pred_fallthru
      _
    // Predicated region
    $region14: #{tpu_custom_call.1} parent=1 // pred_check
      _
    $region15: #{tpu_custom_call.1} parent=1 // pred_check_branch
      %42 = sbr.rel (0) target = $region17
    $region16: #{tpu_custom_call.1} parent=1 // pred_region
      %44 = dma.done [#allocation6], 1024
    $region17: #{tpu_custom_call.1} parent=1 // pred_fallthru
      _
    %v45 = vld [vmem:[#allocation2] sm:$0x3]
    %v46 = vld [vmem:[#allocation5] sm:$0xff]
    %v47 = vld [vmem:[#allocation5 + $0x8] sm:$0xff]
    %v48 = vld [vmem:[#allocation5 + $0x10] sm:$0xff]
    %v49 = vld [vmem:[#allocation5 + $0x18] sm:$0xff]
    %v50 = vld [vmem:[#allocation5 + $0x20] sm:$0xff]
    %v51 = vld [vmem:[#allocation5 + $0x28] sm:$0xff]
    %v52 = vld [vmem:[#allocation5 + $0x30] sm:$0xff]
    %v53 = vld [vmem:[#allocation5 + $0x38] sm:$0xff]
    %vm54 = vcmask 261120
    %v56 = vsel %vm54, %v45, 0
    %58 = vmatpush.msra.mxu0 0.0
    %59 = vmatpush.msra.mxu0 0.0
    %60 = vmatpush.msra.mxu0 0.0
    %61 = vmatpush.msra.mxu0 0.0
    %62 = vmatpush.msra.mxu0 0.0
    %63 = vmatpush.msra.mxu0 0.0
    %64 = vmatpush.msra.mxu0 0.0
    %65 = vmatpush.msra.mxu0 0.0
    %66 = vmatpush.msra.mxu0 0.0
    %67 = vmatpush.msra.mxu0 0.0
    %68 = vmatpush.msra.mxu0 0.0
    %69 = vmatpush.msra.mxu0 0.0
    %v70 = vand.u32 %v52, 4294901760
    %71 = vmatpush.msra.mxu0 %v70
    %v72 = vand.u32 %v50, 4294901760
    %73 = vmatpush.msra.mxu0 %v72
    %v74 = vand.u32 %v48, 4294901760
    %75 = vmatpush.msra.mxu0 %v74
    %v76 = vand.u32 %v46, 4294901760
    %77 = vmatpush.msra.mxu0 %v76
    %v78 = vand.u32 %v56, 4294901760
    %v79 = vsub.f32 %v56, %v78
    %v80 = vand.u32 %v79, 4294901760
    %v81 = vsub.f32 %v79, %v80
    %v82 = vand.u32 %v81, 4294901760
    %83 = vmatmul.f32.gmra.mxu0 %v82
    %v84 = vpop.f32.mrf.mxu0
    %v85 = vadd.f32 0.0, %v84
    %86 = vdwg.mxu0
    %87 = vmatpush.msra.mxu0 0.0
    %88 = vmatpush.msra.mxu0 0.0
    %89 = vmatpush.msra.mxu0 0.0
    %90 = vmatpush.msra.mxu0 0.0
    %91 = vmatpush.msra.mxu0 0.0
    %92 = vmatpush.msra.mxu0 0.0
    %93 = vmatpush.msra.mxu0 0.0
    %94 = vmatpush.msra.mxu0 0.0
    %95 = vmatpush.msra.mxu0 0.0
    %96 = vmatpush.msra.mxu0 0.0
    %97 = vmatpush.msra.mxu0 0.0
    %98 = vmatpush.msra.mxu0 0.0
    %v99 = vand.u32 %v52, 4294901760
    %v100 = vsub.f32 %v52, %v99
    %v101 = vand.u32 %v100, 4294901760
    %v102 = vsub.f32 %v100, %v101
    %v103 = vand.u32 %v102, 4294901760
    %104 = vmatpush.msra.mxu0 %v103
    %v105 = vand.u32 %v50, 4294901760
    %v106 = vsub.f32 %v50, %v105
    %v107 = vand.u32 %v106, 4294901760
    %v108 = vsub.f32 %v106, %v107
    %v109 = vand.u32 %v108, 4294901760
    %110 = vmatpush.msra.mxu0 %v109
    %v111 = vand.u32 %v48, 4294901760
    %v112 = vsub.f32 %v48, %v111
    %v113 = vand.u32 %v112, 4294901760
    %v114 = vsub.f32 %v112, %v113
    %v115 = vand.u32 %v114, 4294901760
    %116 = vmatpush.msra.mxu0 %v115
    %v117 = vand.u32 %v46, 4294901760
    %v118 = vsub.f32 %v46, %v117
    %v119 = vand.u32 %v118, 4294901760
    %v120 = vsub.f32 %v118, %v119
    %v121 = vand.u32 %v120, 4294901760
    %122 = vmatpush.msra.mxu0 %v121
    %v123 = vand.u32 %v56, 4294901760
    %124 = vmatmul.f32.gmra.mxu0 %v123
    %v125 = vpop.f32.mrf.mxu0
    %v126 = vadd.f32 %v85, %v125
    %127 = vdwg.mxu0
    %128 = vmatpush.msra.mxu0 0.0
    %129 = vmatpush.msra.mxu0 0.0
    %130 = vmatpush.msra.mxu0 0.0
    %131 = vmatpush.msra.mxu0 0.0
    %132 = vmatpush.msra.mxu0 0.0
    %133 = vmatpush.msra.mxu0 0.0
    %134 = vmatpush.msra.mxu0 0.0
    %135 = vmatpush.msra.mxu0 0.0
    %136 = vmatpush.msra.mxu0 0.0
    %137 = vmatpush.msra.mxu0 0.0
    %138 = vmatpush.msra.mxu0 0.0
    %139 = vmatpush.msra.mxu0 0.0
    %v140 = vand.u32 %v52, 4294901760
    %v141 = vsub.f32 %v52, %v140
    %142 = vmatpush.msra.mxu0 %v141
    %v143 = vand.u32 %v50, 4294901760
    %v144 = vsub.f32 %v50, %v143
    %145 = vmatpush.msra.mxu0 %v144
    %v146 = vand.u32 %v48, 4294901760
    %v147 = vsub.f32 %v48, %v146
    %148 = vmatpush.msra.mxu0 %v147
    %v149 = vand.u32 %v46, 4294901760
    %v150 = vsub.f32 %v46, %v149
    %151 = vmatpush.msra.mxu0 %v150
    %v152 = vand.u32 %v56, 4294901760
    %v153 = vsub.f32 %v56, %v152
    %154 = vmatmul.f32.gmra.mxu0 %v153
    %v155 = vpop.f32.mrf.mxu0
    %v156 = vadd.f32 %v126, %v155
    %157 = vdwg.mxu0
    %158 = vmatpush.msra.mxu0 0.0
    %159 = vmatpush.msra.mxu0 0.0
    %160 = vmatpush.msra.mxu0 0.0
    %161 = vmatpush.msra.mxu0 0.0
    %162 = vmatpush.msra.mxu0 0.0
    %163 = vmatpush.msra.mxu0 0.0
    %164 = vmatpush.msra.mxu0 0.0
    %165 = vmatpush.msra.mxu0 0.0
    %166 = vmatpush.msra.mxu0 0.0
    %167 = vmatpush.msra.mxu0 0.0
    %168 = vmatpush.msra.mxu0 0.0
    %169 = vmatpush.msra.mxu0 0.0
    %v170 = vand.u32 %v52, 4294901760
    %171 = vmatpush.msra.mxu0 %v170
    %v172 = vand.u32 %v50, 4294901760
    %173 = vmatpush.msra.mxu0 %v172
    %v174 = vand.u32 %v48, 4294901760
    %175 = vmatpush.msra.mxu0 %v174
    %v176 = vand.u32 %v46, 4294901760
    %177 = vmatpush.msra.mxu0 %v176
    %v178 = vand.u32 %v56, 4294901760
    %v179 = vsub.f32 %v56, %v178
    %v180 = vand.u32 %v179, 4294901760
    %181 = vmatmul.f32.gmra.mxu0 %v180
    %v182 = vpop.f32.mrf.mxu0
    %v183 = vadd.f32 %v156, %v182
    %184 = vdwg.mxu0
    %185 = vmatpush.msra.mxu0 0.0
    %186 = vmatpush.msra.mxu0 0.0
    %187 = vmatpush.msra.mxu0 0.0
    %188 = vmatpush.msra.mxu0 0.0
    %189 = vmatpush.msra.mxu0 0.0
    %190 = vmatpush.msra.mxu0 0.0
    %191 = vmatpush.msra.mxu0 0.0
    %192 = vmatpush.msra.mxu0 0.0
    %193 = vmatpush.msra.mxu0 0.0
    %194 = vmatpush.msra.mxu0 0.0
    %195 = vmatpush.msra.mxu0 0.0
    %196 = vmatpush.msra.mxu0 0.0
    %v197 = vand.u32 %v52, 4294901760
    %v198 = vsub.f32 %v52, %v197
    %v199 = vand.u32 %v198, 4294901760
    %200 = vmatpush.msra.mxu0 %v199
    %v201 = vand.u32 %v50, 4294901760
    %v202 = vsub.f32 %v50, %v201
    %v203 = vand.u32 %v202, 4294901760
    %204 = vmatpush.msra.mxu0 %v203
    %v205 = vand.u32 %v48, 4294901760
    %v206 = vsub.f32 %v48, %v205
    %v207 = vand.u32 %v206, 4294901760
    %208 = vmatpush.msra.mxu0 %v207
    %v209 = vand.u32 %v46, 4294901760
    %v210 = vsub.f32 %v46, %v209
    %v211 = vand.u32 %v210, 4294901760
    %212 = vmatpush.msra.mxu0 %v211
    %v213 = vand.u32 %v56, 4294901760
    %214 = vmatmul.f32.gmra.mxu0 %v213
    %v215 = vpop.f32.mrf.mxu0
    %v216 = vadd.f32 %v183, %v215
    %217 = vdwg.mxu0
    %218 = vmatpush.msra.mxu0 0.0
    %219 = vmatpush.msra.mxu0 0.0
    %220 = vmatpush.msra.mxu0 0.0
    %221 = vmatpush.msra.mxu0 0.0
    %222 = vmatpush.msra.mxu0 0.0
    %223 = vmatpush.msra.mxu0 0.0
    %224 = vmatpush.msra.mxu0 0.0
    %225 = vmatpush.msra.mxu0 0.0
    %226 = vmatpush.msra.mxu0 0.0
    %227 = vmatpush.msra.mxu0 0.0
    %228 = vmatpush.msra.mxu0 0.0
    %229 = vmatpush.msra.mxu0 0.0
    %v230 = vand.u32 %v52, 4294901760
    %231 = vmatpush.msra.mxu0 %v230
    %v232 = vand.u32 %v50, 4294901760
    %233 = vmatpush.msra.mxu0 %v232
    %v234 = vand.u32 %v48, 4294901760
    %235 = vmatpush.msra.mxu0 %v234
    %v236 = vand.u32 %v46, 4294901760
    %237 = vmatpush.msra.mxu0 %v236
    %v238 = vand.u32 %v56, 4294901760
    %239 = vmatmul.f32.gmra.mxu0 %v238
    %v240 = vpop.f32.mrf.mxu0
    %v241 = vadd.f32 %v216, %v240
    %242 = vdwg.mxu0
    %243 = vmatpush.msra.mxu0 0.0
    %244 = vmatpush.msra.mxu0 0.0
    %245 = vmatpush.msra.mxu0 0.0
    %246 = vmatpush.msra.mxu0 0.0
    %247 = vmatpush.msra.mxu0 0.0
    %248 = vmatpush.msra.mxu0 0.0
    %249 = vmatpush.msra.mxu0 0.0
    %250 = vmatpush.msra.mxu0 0.0
    %251 = vmatpush.msra.mxu0 0.0
    %252 = vmatpush.msra.mxu0 0.0
    %253 = vmatpush.msra.mxu0 0.0
    %254 = vmatpush.msra.mxu0 0.0
    %v255 = vand.u32 %v53, 4294901760
    %256 = vmatpush.msra.mxu0 %v255
    %v257 = vand.u32 %v51, 4294901760
    %258 = vmatpush.msra.mxu0 %v257
    %v259 = vand.u32 %v49, 4294901760
    %260 = vmatpush.msra.mxu0 %v259
    %v261 = vand.u32 %v47, 4294901760
    %262 = vmatpush.msra.mxu0 %v261
    %v263 = vand.u32 %v56, 4294901760
    %v264 = vsub.f32 %v56, %v263
    %v265 = vand.u32 %v264, 4294901760
    %v266 = vsub.f32 %v264, %v265
    %v267 = vand.u32 %v266, 4294901760
    %268 = vmatmul.f32.gmra.mxu0 %v267
    %v269 = vpop.f32.mrf.mxu0
    %v270 = vadd.f32 0.0, %v269
    %271 = vdwg.mxu0
    %272 = vmatpush.msra.mxu0 0.0
    %273 = vmatpush.msra.mxu0 0.0
    %274 = vmatpush.msra.mxu0 0.0
    %275 = vmatpush.msra.mxu0 0.0
    %276 = vmatpush.msra.mxu0 0.0
    %277 = vmatpush.msra.mxu0 0.0
    %278 = vmatpush.msra.mxu0 0.0
    %279 = vmatpush.msra.mxu0 0.0
    %280 = vmatpush.msra.mxu0 0.0
    %281 = vmatpush.msra.mxu0 0.0
    %282 = vmatpush.msra.mxu0 0.0
    %283 = vmatpush.msra.mxu0 0.0
    %v284 = vand.u32 %v53, 4294901760
    %v285 = vsub.f32 %v53, %v284
    %v286 = vand.u32 %v285, 4294901760
    %v287 = vsub.f32 %v285, %v286
    %v288 = vand.u32 %v287, 4294901760
    %289 = vmatpush.msra.mxu0 %v288
    %v290 = vand.u32 %v51, 4294901760
    %v291 = vsub.f32 %v51, %v290
    %v292 = vand.u32 %v291, 4294901760
    %v293 = vsub.f32 %v291, %v292
    %v294 = vand.u32 %v293, 4294901760
    %295 = vmatpush.msra.mxu0 %v294
    %v296 = vand.u32 %v49, 4294901760
    %v297 = vsub.f32 %v49, %v296
    %v298 = vand.u32 %v297, 4294901760
    %v299 = vsub.f32 %v297, %v298
    %v300 = vand.u32 %v299, 4294901760
    %301 = vmatpush.msra.mxu0 %v300
    %v302 = vand.u32 %v47, 4294901760
    %v303 = vsub.f32 %v47, %v302
    %v304 = vand.u32 %v303, 4294901760
    %v305 = vsub.f32 %v303, %v304
    %v306 = vand.u32 %v305, 4294901760
    %307 = vmatpush.msra.mxu0 %v306
    %v308 = vand.u32 %v56, 4294901760
    %309 = vmatmul.f32.gmra.mxu0 %v308
    %v310 = vpop.f32.mrf.mxu0
    %v311 = vadd.f32 %v270, %v310
    %312 = vdwg.mxu0
    %313 = vmatpush.msra.mxu0 0.0
    %314 = vmatpush.msra.mxu0 0.0
    %315 = vmatpush.msra.mxu0 0.0
    %316 = vmatpush.msra.mxu0 0.0
    %317 = vmatpush.msra.mxu0 0.0
    %318 = vmatpush.msra.mxu0 0.0
    %319 = vmatpush.msra.mxu0 0.0
    %320 = vmatpush.msra.mxu0 0.0
    %321 = vmatpush.msra.mxu0 0.0
    %322 = vmatpush.msra.mxu0 0.0
    %323 = vmatpush.msra.mxu0 0.0
    %324 = vmatpush.msra.mxu0 0.0
    %v325 = vand.u32 %v53, 4294901760
    %v326 = vsub.f32 %v53, %v325
    %327 = vmatpush.msra.mxu0 %v326
    %v328 = vand.u32 %v51, 4294901760
    %v329 = vsub.f32 %v51, %v328
    %330 = vmatpush.msra.mxu0 %v329
    %v331 = vand.u32 %v49, 4294901760
    %v332 = vsub.f32 %v49, %v331
    %333 = vmatpush.msra.mxu0 %v332
    %v334 = vand.u32 %v47, 4294901760
    %v335 = vsub.f32 %v47, %v334
    %336 = vmatpush.msra.mxu0 %v335
    %v337 = vand.u32 %v56, 4294901760
    %v338 = vsub.f32 %v56, %v337
    %339 = vmatmul.f32.gmra.mxu0 %v338
    %v340 = vpop.f32.mrf.mxu0
    %v341 = vadd.f32 %v311, %v340
    %342 = vdwg.mxu0
    %343 = vmatpush.msra.mxu0 0.0
    %344 = vmatpush.msra.mxu0 0.0
    %345 = vmatpush.msra.mxu0 0.0
    %346 = vmatpush.msra.mxu0 0.0
    %347 = vmatpush.msra.mxu0 0.0
    %348 = vmatpush.msra.mxu0 0.0
    %349 = vmatpush.msra.mxu0 0.0
    %350 = vmatpush.msra.mxu0 0.0
    %351 = vmatpush.msra.mxu0 0.0
    %352 = vmatpush.msra.mxu0 0.0
    %353 = vmatpush.msra.mxu0 0.0
    %354 = vmatpush.msra.mxu0 0.0
    %v355 = vand.u32 %v53, 4294901760
    %356 = vmatpush.msra.mxu0 %v355
    %v357 = vand.u32 %v51, 4294901760
    %358 = vmatpush.msra.mxu0 %v357
    %v359 = vand.u32 %v49, 4294901760
    %360 = vmatpush.msra.mxu0 %v359
    %v361 = vand.u32 %v47, 4294901760
    %362 = vmatpush.msra.mxu0 %v361
    %v363 = vand.u32 %v56, 4294901760
    %v364 = vsub.f32 %v56, %v363
    %v365 = vand.u32 %v364, 4294901760
    %366 = vmatmul.f32.gmra.mxu0 %v365
    %v367 = vpop.f32.mrf.mxu0
    %v368 = vadd.f32 %v341, %v367
    %369 = vdwg.mxu0
    %370 = vmatpush.msra.mxu0 0.0
    %371 = vmatpush.msra.mxu0 0.0
    %372 = vmatpush.msra.mxu0 0.0
    %373 = vmatpush.msra.mxu0 0.0
    %374 = vmatpush.msra.mxu0 0.0
    %375 = vmatpush.msra.mxu0 0.0
    %376 = vmatpush.msra.mxu0 0.0
    %377 = vmatpush.msra.mxu0 0.0
    %378 = vmatpush.msra.mxu0 0.0
    %379 = vmatpush.msra.mxu0 0.0
    %380 = vmatpush.msra.mxu0 0.0
    %381 = vmatpush.msra.mxu0 0.0
    %v382 = vand.u32 %v53, 4294901760
    %v383 = vsub.f32 %v53, %v382
    %v384 = vand.u32 %v383, 4294901760
    %385 = vmatpush.msra.mxu0 %v384
    %v386 = vand.u32 %v51, 4294901760
    %v387 = vsub.f32 %v51, %v386
    %v388 = vand.u32 %v387, 4294901760
    %389 = vmatpush.msra.mxu0 %v388
    %v390 = vand.u32 %v49, 4294901760
    %v391 = vsub.f32 %v49, %v390
    %v392 = vand.u32 %v391, 4294901760
    %393 = vmatpush.msra.mxu0 %v392
    %v394 = vand.u32 %v47, 4294901760
    %v395 = vsub.f32 %v47, %v394
    %v396 = vand.u32 %v395, 4294901760
    %397 = vmatpush.msra.mxu0 %v396
    %v398 = vand.u32 %v56, 4294901760
    %399 = vmatmul.f32.gmra.mxu0 %v398
    %v400 = vpop.f32.mrf.mxu0
    %v401 = vadd.f32 %v368, %v400
    %402 = vdwg.mxu0
    %403 = vmatpush.msra.mxu0 0.0
    %404 = vmatpush.msra.mxu0 0.0
    %405 = vmatpush.msra.mxu0 0.0
    %406 = vmatpush.msra.mxu0 0.0
    %407 = vmatpush.msra.mxu0 0.0
    %408 = vmatpush.msra.mxu0 0.0
    %409 = vmatpush.msra.mxu0 0.0
    %410 = vmatpush.msra.mxu0 0.0
    %411 = vmatpush.msra.mxu0 0.0
    %412 = vmatpush.msra.mxu0 0.0
    %413 = vmatpush.msra.mxu0 0.0
    %414 = vmatpush.msra.mxu0 0.0
    %v415 = vand.u32 %v53, 4294901760
    %416 = vmatpush.msra.mxu0 %v415
    %v417 = vand.u32 %v51, 4294901760
    %418 = vmatpush.msra.mxu0 %v417
    %v419 = vand.u32 %v49, 4294901760
    %420 = vmatpush.msra.mxu0 %v419
    %v421 = vand.u32 %v47, 4294901760
    %422 = vmatpush.msra.mxu0 %v421
    %v423 = vand.u32 %v56, 4294901760
    %424 = vmatmul.f32.gmra.mxu0 %v423
    %v425 = vpop.f32.mrf.mxu0
    %v426 = vadd.f32 %v401, %v425
    %427 = vdwg.mxu0
    %v428 = vmul.f32 %v45, %v45
    %vm429 = vcmask 254976
    %v430 = vsel %vm429, %v428, 0.0
    %431 = vadd.xlane.f32.xlu0 %v430
    %v432 = vpop.xlane.xlu0 %431
    %v433 = vmul.f32 %v46, %v46
    %v434 = vmul.f32 %v47, %v47
    %v435 = vmul.f32 %v48, %v48
    %v436 = vmul.f32 %v49, %v49
    %v437 = vmul.f32 %v50, %v50
    %v438 = vmul.f32 %v51, %v51
    %v439 = vmul.f32 %v52, %v52
    %v440 = vmul.f32 %v53, %v53
    %v441 = vadd.f32 %v433, %v435
    %v442 = vadd.f32 %v441, %v437
    %v443 = vadd.f32 %v442, %v439
    %v444 = vrot.slane %v443, 4
    %v445 = vadd.f32 %v443, %v444
    %v446 = vrot.slane %v445, 2
    %v447 = vadd.f32 %v445, %v446
    %v448 = vrot.slane %v447, 1
    %v449 = vadd.f32 %v447, %v448
    %v450 = vadd.f32 %v434, %v436
    %v451 = vadd.f32 %v450, %v438
    %v452 = vadd.f32 %v451, %v440
    %v453 = vrot.slane %v452, 4
    %v454 = vadd.f32 %v452, %v453
    %v455 = vrot.slane %v454, 2
    %v456 = vadd.f32 %v454, %v455
    %v457 = vrot.slane %v456, 1
    %v458 = vadd.f32 %v456, %v457
    %v459 = vadd.f32 %v432, %v449
    %v460 = vadd.f32 %v432, %v458
    %v461 = vmul.f32 %v241, 2.0
    %v462 = vmul.f32 %v426, 2.0
    %v463 = vsub.f32 %v459, %v461
    %v464 = vsub.f32 %v460, %v462
    %v465 = vmax.f32 %v463, 0.0
    %v466 = vmax.f32 %v464, 0.0
    %v467 = vrsqrt.pop %v465
    %v468 = vmul.f32 %v467, %v465
    %v469 = vmul.f32 %v468, %v467
    %v470 = vmul.f32 0.5, %v469
    %v471 = vsub.f32 1.5, %v470
    %v472 = vmul.f32 %v467, %v471
    %v473 = vmul.f32 %v465, %v472
    %vm474 = vcmp.eq.f32.partialorder %v465, inf
    %v475 = vsel %vm474, %v465, %v473
    %vm476 = vcmp.eq.f32.partialorder %v465, 0.0
    %v477 = vand.u32 %v465, 2147483648
    %v478 = vsel %vm476, %v477, %v475
    %v479 = vrsqrt.pop %v466
    %v480 = vmul.f32 %v479, %v466
    %v481 = vmul.f32 %v480, %v479
    %v482 = vmul.f32 0.5, %v481
    %v483 = vsub.f32 1.5, %v482
    %v484 = vmul.f32 %v479, %v483
    %v485 = vmul.f32 %v466, %v484
    %vm486 = vcmp.eq.f32.partialorder %v466, inf
    %v487 = vsel %vm486, %v466, %v485
    %vm488 = vcmp.eq.f32.partialorder %v466, 0.0
    %v489 = vand.u32 %v466, 2147483648
    %v490 = vsel %vm488, %v489, %v487
    %491 = vst [vmem:[#allocation7] sm:$0x3] %v478
    %492 = vst [vmem:[#allocation8] sm:$0x3] %v490
    // Predicated region
    $region18: #{tpu_custom_call.1} parent=1 // pred_check
      _
    $region19: #{tpu_custom_call.1} parent=1 // pred_check_branch
      %494 = sbr.rel (0) target = $region21
    $region20: #{tpu_custom_call.1} parent=1 // pred_region
      %496 = vsyncadd [#allocation4], 0
      %s498 = sshll.u32 [#allocation7], 4
      %s499 = int_to_ptr.vmem [resolvable:$true] %s498
      %s500 = sshll.u32 %s2, 4
      %s501 = int_to_ptr.hbm [resolvable:$true] %s500
      %503 = dma.vmem_to_hbm [thread:$0]  %s499, 32, %s501, [#allocation4]
    $region21: #{tpu_custom_call.1} parent=1 // pred_fallthru
      _
    // Predicated region
    $region22: #{tpu_custom_call.1} parent=1 // pred_check
      _
    $region23: #{tpu_custom_call.1} parent=1 // pred_check_branch
      %505 = sbr.rel (0) target = $region25
    $region24: #{tpu_custom_call.1} parent=1 // pred_region
      %507 = vsyncadd [#allocation9], 0
      %s509 = sshll.u32 [#allocation8], 4
      %s510 = int_to_ptr.vmem [resolvable:$true] %s509
      %s511 = sshll.u32 %s3, 4
      %s512 = int_to_ptr.hbm [resolvable:$true] %s511
      %514 = dma.vmem_to_hbm [thread:$0]  %s510, 32, %s512, [#allocation9]
    $region25: #{tpu_custom_call.1} parent=1 // pred_fallthru
      _
    // Predicated region
    $region26: #{tpu_custom_call.1} parent=1 // pred_check
      _
    $region27: #{tpu_custom_call.1} parent=1 // pred_check_branch
      %516 = sbr.rel (0) target = $region29
    $region28: #{tpu_custom_call.1} parent=1 // pred_region
      %518 = dma.done [#allocation4], 32
    $region29: #{tpu_custom_call.1} parent=1 // pred_fallthru
      _
    // Predicated region
    $region30: #{tpu_custom_call.1} parent=1 // pred_check
      _
    $region31: #{tpu_custom_call.1} parent=1 // pred_check_branch
      %520 = sbr.rel (0) target = $region33
    $region32: #{tpu_custom_call.1} parent=1 // pred_region
      %522 = dma.done [#allocation9], 32
    $region33: #{tpu_custom_call.1} parent=1 // pred_fallthru
      _
    %523 = vsyncpa [#allocation3], 1
    %524 = vsyncpa [#allocation6], 1
    %525 = vsyncpa [#allocation4], 1
    %526 = vsyncpa [#allocation9], 1

</llo_original>
